<compile_context>
chip_gen: v7x
topology: tpu7x:2x2x1
jax: 0.10.0
libtpu: 0.0.40
codegen_flags: <defaults>
</compile_context>

<pallas_src>
import functools

import jax
import jax.numpy as jnp
from jax.experimental import pallas as pl
from jax.experimental.pallas import tpu as pltpu


# ----------------------------- fused kernel ---------------------------------
def _basic_block_kernel(h1, w1_sz, cin, planes, pad_l, has_proj, modified,
                        *refs):
    if has_proj:
        (xcol_ref, w1_ref, b1_ref, w2_ref, b2_ref, ws_ref, bs_ref,
         out_ref, mid_ref) = refs
    else:
        (xcol_ref, w1_ref, b1_ref, w2_ref, b2_ref, out_ref, mid_ref) = refs

    m = h1 * w1_sz
    halo = w1_sz + 1

    # ---- conv1 (3x3, stride s) + folded BN + ReLU : ONE MXU dot -------------
    a1 = jnp.dot(w1_ref[...], xcol_ref[0],
                 preferred_element_type=jnp.float32)             # (planes, m)
    a1 = jnp.maximum(a1 + b1_ref[...], 0.0)

    # ---- stash a1 in a flat zero-haloed VMEM scratch (never touches HBM) ----
    zeros_halo = jnp.zeros((planes, halo), jnp.float32)
    mid_ref[:, pl.ds(pad_l - halo, halo)] = zeros_halo            # top halo
    mid_ref[:, pl.ds(pad_l + m, halo)] = zeros_halo               # bottom halo
    mid_ref[:, pl.ds(pad_l, m)] = a1                              # lane-aligned

    # ---- conv2 (3x3, stride 1) + folded BN : ONE MXU dot --------------------
    # A 2-D shift by (dy-1, dx-1) is a constant shift of (dy-1)*W1 + (dx-1) in
    # the flat index, so every tap is a static contiguous lane-slice of the
    # haloed scratch.  Vertical out-of-range lands in the zero halo; only the
    # horizontal out-of-range lanes need masking.
    ox = jax.lax.broadcasted_iota(jnp.int32, (planes, m), 1) % w1_sz
    mask_l = ox >= 1                    # valid lanes when reading column ox-1
    mask_r = ox <= w1_sz - 2            # valid lanes when reading column ox+1
    cols = []
    for dy in range(3):
        for dx in range(3):
            start = pad_l + (dy - 1) * w1_sz + (dx - 1)
            sl = mid_ref[:, pl.ds(start, m)]
            if dx == 0:
                sl = jnp.where(mask_l, sl, 0.0)
            elif dx == 2:
                sl = jnp.where(mask_r, sl, 0.0)
            cols.append(sl)
    col2 = jnp.concatenate(cols, axis=0).astype(jnp.bfloat16)     # (9*planes, m)
    main = jnp.dot(w2_ref[...], col2,
                   preferred_element_type=jnp.float32) + b2_ref[...]

    # ---- shortcut ------------------------------------------------------------
    # Centre-tap rows of the conv1 column matrix are exactly x[:, :, ::s, ::s].
    x_c = xcol_ref[0, pl.ds(4 * cin, cin), :]                     # (cin, m) bf16
    if has_proj:
        sc = jnp.dot(ws_ref[...], x_c,
                     preferred_element_type=jnp.float32) + bs_ref[...]
        if modified:
            sc = jnp.maximum(sc, 0.0)
    else:
        sc = x_c.astype(jnp.float32)

    # ---- combine (modified vs classic post-activation) -----------------------
    if modified:
        res = jnp.maximum(main, 0.0) + sc
    else:
        res = jnp.maximum(main + sc, 0.0)
    out_ref[0] = res.astype(out_ref.dtype)


# ----------------------------- public wrapper --------------------------------
def basic_block_forward(x_nchw, params, *, stride, modified=True):
    """Fused BasicBlock forward. x_nchw: (N, Cin, H, W) f32 -> (N, P, H1, W1) f32."""
    n, cin, h, w = x_nchw.shape
    planes = params["w1"].shape[-1]
    s = int(stride)
    has_proj = "ws" in params
    h1 = (h - 1) // s + 1
    w1 = (w - 1) // s + 1
    m = h1 * w1
    pad_l = 128                         # left halo rounded to a full lane tile
    mid_len = pad_l + m + w1 + 1        # so the per-step interior store is aligned

    # im2col column matrix in the wrapper: (n, 9*cin, m), channel-major, bf16.
    # Tiny at these shapes (tens of KB) and the only extra HBM pass: NCHW stays
    # NCHW end-to-end, no layout transposes.
    xpad = jnp.pad(x_nchw, ((0, 0), (0, 0), (1, 1), (1, 1)))
    taps = []
    for dy in range(3):
        for dx in range(3):
            taps.append(jax.lax.slice(
                xpad, (0, 0, dy, dx),
                (n, cin, dy + s * (h1 - 1) + 1, dx + s * (w1 - 1) + 1),
                (1, 1, s, s)))
    xcol = jnp.stack(taps, axis=1).reshape(n, 9 * cin, m).astype(jnp.bfloat16)

    # Kernel-ready weights: BN scale folded in (f32) then cast to bf16; layout
    # (planes, K) with K = (dy*3+dx)*cin_in + c, matching xcol / in-kernel col2.
    w1k = (jnp.transpose(params["w1"], (3, 0, 1, 2)).reshape(planes, 9 * cin)
           * params["s1"][:, None]).astype(jnp.bfloat16)
    w2k = (jnp.transpose(params["w2"], (3, 0, 1, 2)).reshape(planes, 9 * planes)
           * params["s2"][:, None]).astype(jnp.bfloat16)
    b1 = params["b1"].reshape(planes, 1).astype(jnp.float32)
    b2 = params["b2"].reshape(planes, 1).astype(jnp.float32)

    args = [xcol, w1k, b1, w2k, b2]
    in_specs = [
        pl.BlockSpec((1, 9 * cin, m), lambda b: (b, 0, 0)),
        pl.BlockSpec((planes, 9 * cin), lambda b: (0, 0)),
        pl.BlockSpec((planes, 1), lambda b: (0, 0)),
        pl.BlockSpec((planes, 9 * planes), lambda b: (0, 0)),
        pl.BlockSpec((planes, 1), lambda b: (0, 0)),
    ]
    if has_proj:
        wsk = (params["ws"].T * params["ss"][:, None]).astype(jnp.bfloat16)
        bs = params["bs"].reshape(planes, 1).astype(jnp.float32)
        args += [wsk, bs]
        in_specs += [pl.BlockSpec((planes, cin), lambda b: (0, 0)),
                     pl.BlockSpec((planes, 1), lambda b: (0, 0))]

    kernel = functools.partial(_basic_block_kernel, h1, w1, cin, planes, pad_l,
                               has_proj, bool(modified))

    flops = 2 * n * m * (9 * cin * planes + 9 * planes * planes
                         + (cin * planes if has_proj else 0))
    bytes_accessed = (sum(int(a.size) * a.dtype.itemsize for a in args)
                      + n * planes * m * 4)

    out = pl.pallas_call(
        kernel,
        out_shape=jax.ShapeDtypeStruct((n, planes, m), jnp.float32),
        grid=(n,),
        in_specs=in_specs,
        out_specs=pl.BlockSpec((1, planes, m), lambda b: (b, 0, 0)),
        scratch_shapes=[pltpu.VMEM((planes, mid_len), jnp.float32)],
        compiler_params=pltpu.CompilerParams(
            dimension_semantics=("parallel",)),
        cost_estimate=pl.CostEstimate(flops=int(flops), transcendentals=0,
                                      bytes_accessed=int(bytes_accessed)),
    )(*args)
    return out.reshape(n, planes, h1, w1)            # free reshape: already NCHW


basic_block = jax.jit(basic_block_forward, static_argnames=("stride", "modified"))


# ------------------------- parameter construction ----------------------------
def _fold_bn(gamma, beta, mean, var, eps=1e-5):
    scale = gamma / jnp.sqrt(var + eps)
    return scale, beta - mean * scale


def init_block_params(key, in_planes, planes, stride):
    def nrm(k, shape, s=1.0):
        return jax.random.normal(k, shape, jnp.float32) * s

    def bn_params(k):
        kg, kb, km, kv = jax.random.split(k, 4)
        gamma = 1.0 + 0.1 * nrm(kg, (planes,))
        beta = 0.1 * nrm(kb, (planes,))
        mean = 0.05 * nrm(km, (planes,))
        var = 0.9 + 0.1 * jnp.abs(nrm(kv, (planes,)))
        return _fold_bn(gamma, beta, mean, var)

    k1, k2, k3, k4, k5, k6 = jax.random.split(key, 6)
    p = {"w1": nrm(k1, (3, 3, in_planes, planes), 0.2)}
    p["s1"], p["b1"] = bn_params(k2)
    p["w2"] = nrm(k3, (3, 3, planes, planes), 0.2)
    p["s2"], p["b2"] = bn_params(k4)
    if stride != 1 or in_planes != planes:
        p["ws"] = nrm(k5, (in_planes, planes), 0.3)
        p["ss"], p["bs"] = bn_params(k6)
    return p


# ------------------------- pure-JAX reference --------------------------------
def _q(a):  # model the kernel's bf16 operand quantization (f32 math otherwise)
    return a.astype(jnp.bfloat16).astype(jnp.float32)


def _ref_conv(x_nhwc, w_hwio, stride):
    return jax.lax.conv_general_dilated(
        x_nhwc, w_hwio, (stride, stride), ((1, 1), (1, 1)),
        dimension_numbers=("NHWC", "HWIO", "NHWC"))


def ref_basic_block(x_nchw, p, *, stride, modified=True):
    cin, planes = p["w1"].shape[2], p["w1"].shape[3]
    x = _q(jnp.transpose(x_nchw, (0, 2, 3, 1)))
    w1 = _q(p["w1"] * p["s1"])                 # BN scale folded, as in the kernel
    w2 = _q(p["w2"] * p["s2"])
    out = jax.nn.relu(_ref_conv(x, w1, stride) + p["b1"])
    out = _ref_conv(_q(out), w2, 1) + p["b2"]
    if "ws" in p:
        ws = _q(p["ws"] * p["ss"]).reshape(1, 1, cin, planes)
        sc = jax.lax.conv_general_dilated(
            x, ws, (stride, stride), "VALID",
            dimension_numbers=("NHWC", "HWIO", "NHWC")) + p["bs"]
        if modified:
            sc = jax.nn.relu(sc)
    else:
        sc = x
    out = (jax.nn.relu(out) + sc) if modified else jax.nn.relu(out + sc)
    return jnp.transpose(out, (0, 3, 1, 2))


# --------------------------------- main ---------------------------------------
if __name__ == "__main__":
    key = jax.random.PRNGKey(0)
    kx4, kx8, kp = jax.random.split(key, 3)

    x4 = jax.random.normal(kx4, (2, 4, 16, 16), jnp.float32)   # NCHW
    x8 = jax.random.normal(kx8, (2, 8, 16, 16), jnp.float32)

    configs = [
        # (input, in_planes, planes, stride, modified)
        (x4, 4, 8, 2, True),    # downsampling projection block (default path)
        (x4, 4, 8, 1, False),   # channel-change projection, classic post-act
        (x8, 8, 8, 1, True),    # identity shortcut
    ]

    for i, (x, cin, planes, stride, modified) in enumerate(configs):
        p = init_block_params(jax.random.fold_in(kp, i), cin, planes, stride)
        out = jax.block_until_ready(
            basic_block(x, p, stride=stride, modified=modified))
        ref = jax.block_until_ready(
            ref_basic_block(x, p, stride=stride, modified=modified))
        assert out.shape == ref.shape, (out.shape, ref.shape)
        err = float(jnp.max(jnp.abs(out - ref)))
        # bf16 operands + f32 accumulation: remaining differences are
        # accumulation order only -> well under 1e-2 worst case.
        assert err < 1e-2, (i, err)

    print("KERNEL_OK")
</pallas_src>

<mosaic_0001>
module attributes {stable_mosaic.version = 11 : i64} {
  func.func @_basic_block_kernel(%arg0: i32, %arg1: memref<1x36x64xbf16, #tpu.memory_space<vmem>>, %arg2: memref<8x36xbf16, #tpu.memory_space<vmem>>, %arg3: memref<8x1xf32, #tpu.memory_space<vmem>>, %arg4: memref<8x72xbf16, #tpu.memory_space<vmem>>, %arg5: memref<8x1xf32, #tpu.memory_space<vmem>>, %arg6: memref<8x4xbf16, #tpu.memory_space<vmem>>, %arg7: memref<8x1xf32, #tpu.memory_space<vmem>>, %arg8: memref<1x8x64xf32, #tpu.memory_space<vmem>>, %arg9: memref<8x201xf32, #tpu.memory_space<vmem>>) attributes {dimension_semantics = [#tpu.dimension_semantics<parallel>], iteration_bounds = array<i64: 2>, scalar_prefetch = 0 : i64, scratch_operands = 1 : i64, tpu.core_type = #tpu.core_type<tc>, window_params = [{transform_indices = @transform_0, window_bounds = array<i64: 1, 36, 64>}, {pipeline_mode = #tpu.pipeline_mode<synchronous>, transform_indices = @transform_1, window_bounds = array<i64: 8, 36>}, {pipeline_mode = #tpu.pipeline_mode<synchronous>, transform_indices = @transform_2, window_bounds = array<i64: 8, 1>}, {pipeline_mode = #tpu.pipeline_mode<synchronous>, transform_indices = @transform_3, window_bounds = array<i64: 8, 72>}, {pipeline_mode = #tpu.pipeline_mode<synchronous>, transform_indices = @transform_4, window_bounds = array<i64: 8, 1>}, {pipeline_mode = #tpu.pipeline_mode<synchronous>, transform_indices = @transform_5, window_bounds = array<i64: 8, 4>}, {pipeline_mode = #tpu.pipeline_mode<synchronous>, transform_indices = @transform_6, window_bounds = array<i64: 8, 1>}, {transform_indices = @transform_7, window_bounds = array<i64: 1, 8, 64>}]} {
    %c0 = arith.constant 0 : index
    %c0_0 = arith.constant 0 : index
    %0 = vector.load %arg2[%c0, %c0_0] : memref<8x36xbf16, #tpu.memory_space<vmem>>, vector<8x36xbf16>
    %c0_1 = arith.constant 0 : index
    %c0_2 = arith.constant 0 : index
    %c0_3 = arith.constant 0 : index
    %1 = vector.load %arg1[%c0_1, %c0_2, %c0_3] : memref<1x36x64xbf16, #tpu.memory_space<vmem>>, vector<1x36x64xbf16>
    %2 = vector.shape_cast %1 : vector<1x36x64xbf16> to vector<36x64xbf16>
    %cst = arith.constant dense<0.000000e+00> : vector<8x64xf32>
    %3 = tpu.matmul %0, %2, %cst {dimension_numbers = #tpu.dot_dimension_numbers<[1], [0], [0], [1], [0, 0, 1, 1], [], []>} : vector<8x36xbf16>, vector<36x64xbf16>, vector<8x64xf32> -> vector<8x64xf32>
    %c0_4 = arith.constant 0 : index
    %c0_5 = arith.constant 0 : index
    %4 = vector.load %arg3[%c0_4, %c0_5] : memref<8x1xf32, #tpu.memory_space<vmem>>, vector<8x1xf32>
    %5 = vector.broadcast %4 : vector<8x1xf32> to vector<8x64xf32>
    %6 = arith.addf %3, %5 : vector<8x64xf32>
    %cst_6 = arith.constant 0.000000e+00 : f32
    %7 = vector.broadcast %cst_6 : f32 to vector<8x64xf32>
    %8 = arith.maximumf %6, %7 : vector<8x64xf32>
    %cst_7 = arith.constant 0.000000e+00 : f32
    %9 = vector.broadcast %cst_7 : f32 to vector<8x9xf32>
    %c0_8 = arith.constant 0 : index
    %c119 = arith.constant 119 : index
    %10 = vector.load %arg9[%c0_8, %c119] : memref<8x201xf32, #tpu.memory_space<vmem>>, vector<8x9xf32>
    tpu.vector_store %arg9[%c0_8, %c119], %9 {strides = array<i32>} : memref<8x201xf32, #tpu.memory_space<vmem>>, vector<8x9xf32>,
    %c0_9 = arith.constant 0 : index
    %c192 = arith.constant 192 : index
    %11 = vector.load %arg9[%c0_9, %c192] : memref<8x201xf32, #tpu.memory_space<vmem>>, vector<8x9xf32>
    tpu.vector_store %arg9[%c0_9, %c192], %9 {strides = array<i32>} : memref<8x201xf32, #tpu.memory_space<vmem>>, vector<8x9xf32>,
    %c0_10 = arith.constant 0 : index
    %c128 = arith.constant 128 : index
    %12 = vector.load %arg9[%c0_10, %c128] : memref<8x201xf32, #tpu.memory_space<vmem>>, vector<8x64xf32>
    tpu.vector_store %arg9[%c0_10, %c128], %8 {strides = array<i32>} : memref<8x201xf32, #tpu.memory_space<vmem>>, vector<8x64xf32>,
    %13 = tpu.iota {dimensions = array<i32: 1>} : vector<8x64xi32>
    %c8_i32 = arith.constant 8 : i32
    %c0_i32 = arith.constant 0 : i32
    %14 = arith.cmpi eq, %c8_i32, %c0_i32 : i32
    %c1_i32 = arith.constant 1 : i32
    %15 = arith.select %14, %c1_i32, %c8_i32 : i32
    %16 = vector.broadcast %15 : i32 to vector<8x64xi32>
    %17 = arith.remsi %13, %16 : vector<8x64xi32>
    %c0_i32_11 = arith.constant 0 : i32
    %18 = vector.broadcast %c0_i32_11 : i32 to vector<8x64xi32>
    %19 = arith.cmpi ne, %17, %18 : vector<8x64xi32>
    %c0_i32_12 = arith.constant 0 : i32
    %20 = vector.broadcast %c0_i32_12 : i32 to vector<8x64xi32>
    %21 = arith.cmpi slt, %17, %20 : vector<8x64xi32>
    %c0_i32_13 = arith.constant 0 : i32
    %22 = arith.cmpi slt, %15, %c0_i32_13 : i32
    %23 = vector.broadcast %22 : i1 to vector<8x64xi1>
    %24 = vector.broadcast %23 : vector<8x64xi1> to vector<8x64xi1>
    %25 = arith.xori %21, %24 : vector<8x64xi1>
    %26 = arith.andi %25, %19 : vector<8x64xi1>
    %27 = vector.broadcast %15 : i32 to vector<8x64xi32>
    %28 = arith.addi %17, %27 : vector<8x64xi32>
    %29 = arith.select %26, %28, %17 : vector<8x64xi1>, vector<8x64xi32>
    %c1_i32_14 = arith.constant 1 : i32
    %30 = vector.broadcast %c1_i32_14 : i32 to vector<8x64xi32>
    %31 = arith.cmpi sge, %29, %30 : vector<8x64xi32>
    %c6_i32 = arith.constant 6 : i32
    %32 = vector.broadcast %c6_i32 : i32 to vector<8x64xi32>
    %33 = arith.cmpi sle, %29, %32 : vector<8x64xi32>
    %c0_15 = arith.constant 0 : index
    %c119_16 = arith.constant 119 : index
    %34 = vector.load %arg9[%c0_15, %c119_16] : memref<8x201xf32, #tpu.memory_space<vmem>>, vector<8x64xf32>
    %cst_17 = arith.constant 0.000000e+00 : f32
    %35 = vector.broadcast %cst_17 : f32 to vector<8x64xf32>
    %36 = arith.select %31, %34, %35 : vector<8x64xi1>, vector<8x64xf32>
    %c0_18 = arith.constant 0 : index
    %c120 = arith.constant 120 : index
    %37 = vector.load %arg9[%c0_18, %c120] : memref<8x201xf32, #tpu.memory_space<vmem>>, vector<8x64xf32>
    %c0_19 = arith.constant 0 : index
    %c121 = arith.constant 121 : index
    %38 = vector.load %arg9[%c0_19, %c121] : memref<8x201xf32, #tpu.memory_space<vmem>>, vector<8x64xf32>
    %cst_20 = arith.constant 0.000000e+00 : f32
    %39 = vector.broadcast %cst_20 : f32 to vector<8x64xf32>
    %40 = arith.select %33, %38, %39 : vector<8x64xi1>, vector<8x64xf32>
    %c0_21 = arith.constant 0 : index
    %c127 = arith.constant 127 : index
    %41 = vector.load %arg9[%c0_21, %c127] : memref<8x201xf32, #tpu.memory_space<vmem>>, vector<8x64xf32>
    %cst_22 = arith.constant 0.000000e+00 : f32
    %42 = vector.broadcast %cst_22 : f32 to vector<8x64xf32>
    %43 = arith.select %31, %41, %42 : vector<8x64xi1>, vector<8x64xf32>
    %c0_23 = arith.constant 0 : index
    %c128_24 = arith.constant 128 : index
    %44 = vector.load %arg9[%c0_23, %c128_24] : memref<8x201xf32, #tpu.memory_space<vmem>>, vector<8x64xf32>
    %c0_25 = arith.constant 0 : index
    %c129 = arith.constant 129 : index
    %45 = vector.load %arg9[%c0_25, %c129] : memref<8x201xf32, #tpu.memory_space<vmem>>, vector<8x64xf32>
    %cst_26 = arith.constant 0.000000e+00 : f32
    %46 = vector.broadcast %cst_26 : f32 to vector<8x64xf32>
    %47 = arith.select %33, %45, %46 : vector<8x64xi1>, vector<8x64xf32>
    %c0_27 = arith.constant 0 : index
    %c135 = arith.constant 135 : index
    %48 = vector.load %arg9[%c0_27, %c135] : memref<8x201xf32, #tpu.memory_space<vmem>>, vector<8x64xf32>
    %cst_28 = arith.constant 0.000000e+00 : f32
    %49 = vector.broadcast %cst_28 : f32 to vector<8x64xf32>
    %50 = arith.select %31, %48, %49 : vector<8x64xi1>, vector<8x64xf32>
    %c0_29 = arith.constant 0 : index
    %c136 = arith.constant 136 : index
    %51 = vector.load %arg9[%c0_29, %c136] : memref<8x201xf32, #tpu.memory_space<vmem>>, vector<8x64xf32>
    %c0_30 = arith.constant 0 : index
    %c137 = arith.constant 137 : index
    %52 = vector.load %arg9[%c0_30, %c137] : memref<8x201xf32, #tpu.memory_space<vmem>>, vector<8x64xf32>
    %cst_31 = arith.constant 0.000000e+00 : f32
    %53 = vector.broadcast %cst_31 : f32 to vector<8x64xf32>
    %54 = arith.select %33, %52, %53 : vector<8x64xi1>, vector<8x64xf32>
    %55 = tpu.concatenate %36, %37, %40, %43, %44, %47, %50, %51, %54 in 0 : vector<8x64xf32>, vector<8x64xf32>, vector<8x64xf32>, vector<8x64xf32>, vector<8x64xf32>, vector<8x64xf32>, vector<8x64xf32>, vector<8x64xf32>, vector<8x64xf32> -> vector<72x64xf32>
    %56 = arith.truncf %55 : vector<72x64xf32> to vector<72x64xbf16>
    %c0_32 = arith.constant 0 : index
    %c0_33 = arith.constant 0 : index
    %57 = vector.load %arg4[%c0_32, %c0_33] : memref<8x72xbf16, #tpu.memory_space<vmem>>, vector<8x72xbf16>
    %cst_34 = arith.constant dense<0.000000e+00> : vector<8x64xf32>
    %58 = tpu.matmul %57, %56, %cst_34 {dimension_numbers = #tpu.dot_dimension_numbers<[1], [0], [0], [1], [0, 0, 1, 1], [], []>} : vector<8x72xbf16>, vector<72x64xbf16>, vector<8x64xf32> -> vector<8x64xf32>
    %c0_35 = arith.constant 0 : index
    %c0_36 = arith.constant 0 : index
    %59 = vector.load %arg5[%c0_35, %c0_36] : memref<8x1xf32, #tpu.memory_space<vmem>>, vector<8x1xf32>
    %60 = vector.broadcast %59 : vector<8x1xf32> to vector<8x64xf32>
    %61 = arith.addf %58, %60 : vector<8x64xf32>
    %c0_37 = arith.constant 0 : index
    %c16 = arith.constant 16 : index
    %c0_38 = arith.constant 0 : index
    %62 = vector.load %arg1[%c0_37, %c16, %c0_38] : memref<1x36x64xbf16, #tpu.memory_space<vmem>>, vector<1x4x64xbf16>
    %63 = vector.shape_cast %62 : vector<1x4x64xbf16> to vector<4x64xbf16>
    %c0_39 = arith.constant 0 : index
    %c0_40 = arith.constant 0 : index
    %64 = vector.load %arg6[%c0_39, %c0_40] : memref<8x4xbf16, #tpu.memory_space<vmem>>, vector<8x4xbf16>
    %cst_41 = arith.constant dense<0.000000e+00> : vector<8x64xf32>
    %65 = tpu.matmul %64, %63, %cst_41 {dimension_numbers = #tpu.dot_dimension_numbers<[1], [0], [0], [1], [0, 0, 1, 1], [], []>} : vector<8x4xbf16>, vector<4x64xbf16>, vector<8x64xf32> -> vector<8x64xf32>
    %c0_42 = arith.constant 0 : index
    %c0_43 = arith.constant 0 : index
    %66 = vector.load %arg7[%c0_42, %c0_43] : memref<8x1xf32, #tpu.memory_space<vmem>>, vector<8x1xf32>
    %67 = vector.broadcast %66 : vector<8x1xf32> to vector<8x64xf32>
    %68 = arith.addf %65, %67 : vector<8x64xf32>
    %cst_44 = arith.constant 0.000000e+00 : f32
    %69 = vector.broadcast %cst_44 : f32 to vector<8x64xf32>
    %70 = arith.maximumf %68, %69 : vector<8x64xf32>
    %cst_45 = arith.constant 0.000000e+00 : f32
    %71 = vector.broadcast %cst_45 : f32 to vector<8x64xf32>
    %72 = arith.maximumf %61, %71 : vector<8x64xf32>
    %73 = arith.addf %72, %70 : vector<8x64xf32>
    %c0_46 = arith.constant 0 : index
    %c0_47 = arith.constant 0 : index
    %c0_48 = arith.constant 0 : index
    %74 = vector.load %arg8[%c0_46, %c0_47, %c0_48] : memref<1x8x64xf32, #tpu.memory_space<vmem>>, vector<1x8x64xf32>
    %75 = vector.shape_cast %74 : vector<1x8x64xf32> to vector<8x64xf32>
    %76 = vector.shape_cast %73 : vector<8x64xf32> to vector<1x8x64xf32>
    tpu.vector_store %arg8[%c0_46, %c0_47, %c0_48], %76 {strides = array<i32>} : memref<1x8x64xf32, #tpu.memory_space<vmem>>, vector<1x8x64xf32>,
    return
  }
  func.func @transform_0(%arg0: i32) -> (i32, i32, i32) {
    %c0_i32 = arith.constant 0 : i32
    %c0_i32_0 = arith.constant 0 : i32
    %c0_i32_1 = arith.constant 0 : i32
    return %arg0, %c0_i32, %c0_i32_0 : i32, i32, i32
  }
  func.func @transform_1(%arg0: i32) -> (i32, i32) {
    %c0_i32 = arith.constant 0 : i32
    %c0_i32_0 = arith.constant 0 : i32
    %c0_i32_1 = arith.constant 0 : i32
    return %c0_i32, %c0_i32_0 : i32, i32
  }
  func.func @transform_2(%arg0: i32) -> (i32, i32) {
    %c0_i32 = arith.constant 0 : i32
    %c0_i32_0 = arith.constant 0 : i32
    %c0_i32_1 = arith.constant 0 : i32
    return %c0_i32, %c0_i32_0 : i32, i32
  }
  func.func @transform_3(%arg0: i32) -> (i32, i32) {
    %c0_i32 = arith.constant 0 : i32
    %c0_i32_0 = arith.constant 0 : i32
    %c0_i32_1 = arith.constant 0 : i32
    return %c0_i32, %c0_i32_0 : i32, i32
  }
  func.func @transform_4(%arg0: i32) -> (i32, i32) {
    %c0_i32 = arith.constant 0 : i32
    %c0_i32_0 = arith.constant 0 : i32
    %c0_i32_1 = arith.constant 0 : i32
    return %c0_i32, %c0_i32_0 : i32, i32
  }
  func.func @transform_5(%arg0: i32) -> (i32, i32) {
    %c0_i32 = arith.constant 0 : i32
    %c0_i32_0 = arith.constant 0 : i32
    %c0_i32_1 = arith.constant 0 : i32
    return %c0_i32, %c0_i32_0 : i32, i32
  }
  func.func @transform_6(%arg0: i32) -> (i32, i32) {
    %c0_i32 = arith.constant 0 : i32
    %c0_i32_0 = arith.constant 0 : i32
    %c0_i32_1 = arith.constant 0 : i32
    return %c0_i32, %c0_i32_0 : i32, i32
  }
  func.func @transform_7(%arg0: i32) -> (i32, i32, i32) {
    %c0_i32 = arith.constant 0 : i32
    %c0_i32_0 = arith.constant 0 : i32
    %c0_i32_1 = arith.constant 0 : i32
    return %arg0, %c0_i32, %c0_i32_0 : i32, i32, i32
  }
}

</mosaic_0001>

<llo_original>
// kernel: basic_block_forward.1
$region0: #{basic_block_forward.1}
  #allocation0 [shape = 'u32[]', space=smem, size = 0x4, offset = 0x4, fixed_abs, tag = 'smem constant byte address 0x4 - core index']
  #allocation1 [shape = 'u32[144,128]{1,0:T(1,128)}', space=vmem, size = 0x12000, scoped, tag = 'internal scratch']
  #allocation2 [shape = 'f32[8,201]{1,0:T(8,128)}', space=vmem, size = 0x2000, scoped, tag = 'scratch operand']
  %s0 = inlined_call_operand.vmem [shape: bf16[2,36,64], index: 0, kind: input, shape index: {}]
  %s1 = inlined_call_operand.vmem [shape: bf16[8,36], index: 1, kind: input, shape index: {}]
  %s2 = inlined_call_operand.vmem [shape: f32[8,1], index: 2, kind: input, shape index: {}]
  %s3 = inlined_call_operand.vmem [shape: bf16[8,72], index: 3, kind: input, shape index: {}]
  %s4 = inlined_call_operand.vmem [shape: f32[8,1], index: 4, kind: input, shape index: {}]
  %s5 = inlined_call_operand.vmem [shape: bf16[8,4], index: 5, kind: input, shape index: {}]
  %s6 = inlined_call_operand.vmem [shape: f32[8,1], index: 6, kind: input, shape index: {}]
  %s7 = inlined_call_operand.vmem [shape: f32[2,8,64], index: 7, kind: output, shape index: {}]
  %s8 = sld [smem:[#allocation0]]
  $region61: #{basic_block_forward.1} parent=0
    _
  %s10 = ssub.s32 1, %s8
  %s11 = scalar_select 0, %s10, %s8
  loop: start=0, step=1, limit=4
  $region2: #{basic_block_forward.1} parent=0 // loop_pre_header
    _
  $region3: #{basic_block_forward.1} parent=0 // loop_header
    %s13 = sphi 0, %s17
    %p14 = scmp.ge.s32.totalorder %s13, 4
    %s23 = sphi 0, %s25
    %s26 = sphi 0, %s23
    %s27 = sphi 0, %s26
    %s43 = sphi 0, %s27
    %s47 = sphi 0, %s47
    %s49 = sphi 0, %s47
    %s50 = sphi 0, %s49
    %s64 = sphi 0, %s50
    %s68 = sphi 0, %s68
    %s70 = sphi 0, %s68
    %s71 = sphi 0, %s70
    %s85 = sphi 0, %s71
    %s89 = sphi 0, %s89
    %s91 = sphi 0, %s89
    %s92 = sphi 0, %s91
    %s106 = sphi 0, %s92
    %s110 = sphi 0, %s110
    %s112 = sphi 0, %s110
    %s113 = sphi 0, %s112
    %s127 = sphi 0, %s113
    %s131 = sphi 0, %s131
    %s133 = sphi 0, %s131
    %s134 = sphi 0, %s133
    %s148 = sphi 0, %s134
    %s152 = sphi 0, %s152
    %s154 = sphi 0, %s152
    %s155 = sphi 0, %s154
    %s169 = sphi 0, %s155
    %s175 = sphi 0, %s177
    %s178 = sphi 0, %s175
    %s179 = sphi 0, %s178
    %s195 = sphi 0, %s179
  $region4: #{basic_block_forward.1} parent=0 // loop_header_branch
    %16 = sbr.rel (%p14) target = $region8
  $region5: #{basic_block_forward.1} parent=0 // loop_body
    %s18 = ssub.s32 %s13, 1
    %s19 = ssub.s32 %s13, 2
    %s20 = sadd.s32 %s13, 1
    %s21 = ssub.s32 %s13, %s20
    %p22 = scmp.eq.s32.totalorder %s21, 0
    %s24 = sadd.s32 %s23, 1
    %s25 = scalar_select %p22, %s23, %s24
    %p28 = pneg %p22
    %p29 = scmp.eq.s32.totalorder %s13, 1
    %p30 = por %p28, %p29
    %p31 = scmp.ne.s32.totalorder %s23, %s26
    %p32 = scmp.eq.s32.totalorder %s13, 0
    %p33 = por %p31, %p32
    %p34 = scmp.ne.s32.totalorder %s23, %s26
    %p35 = scmp.eq.s32.totalorder %s18, 1
    %p36 = por %p34, %p35
    %p37 = scmp.ne.s32.totalorder %s26, %s27
    %p38 = scmp.eq.s32.totalorder %s18, 0
    %p39 = por %p37, %p38
    %p40 = scmp.ne.s32.totalorder %s26, %s27
    %p41 = scmp.eq.s32.totalorder %s19, 1
    %p42 = por %p40, %p41
    %p44 = scmp.ne.s32.totalorder %s27, %s43
    %p45 = scmp.eq.s32.totalorder %s19, 0
    %p46 = por %p44, %p45
    %s48 = sadd.s32 %s47, 1
    %p51 = scmp.eq.s32.totalorder %s13, 1
    %p52 = scmp.ne.s32.totalorder %s47, %s49
    %p53 = scmp.eq.s32.totalorder %s13, 0
    %p54 = por %p52, %p53
    %p55 = scmp.ne.s32.totalorder %s47, %s49
    %p56 = scmp.eq.s32.totalorder %s18, 1
    %p57 = por %p55, %p56
    %p58 = scmp.ne.s32.totalorder %s49, %s50
    %p59 = scmp.eq.s32.totalorder %s18, 0
    %p60 = por %p58, %p59
    %p61 = scmp.ne.s32.totalorder %s49, %s50
    %p62 = scmp.eq.s32.totalorder %s19, 1
    %p63 = por %p61, %p62
    %p65 = scmp.ne.s32.totalorder %s50, %s64
    %p66 = scmp.eq.s32.totalorder %s19, 0
    %p67 = por %p65, %p66
    %s69 = sadd.s32 %s68, 1
    %p72 = scmp.eq.s32.totalorder %s13, 1
    %p73 = scmp.ne.s32.totalorder %s68, %s70
    %p74 = scmp.eq.s32.totalorder %s13, 0
    %p75 = por %p73, %p74
    %p76 = scmp.ne.s32.totalorder %s68, %s70
    %p77 = scmp.eq.s32.totalorder %s18, 1
    %p78 = por %p76, %p77
    %p79 = scmp.ne.s32.totalorder %s70, %s71
    %p80 = scmp.eq.s32.totalorder %s18, 0
    %p81 = por %p79, %p80
    %p82 = scmp.ne.s32.totalorder %s70, %s71
    %p83 = scmp.eq.s32.totalorder %s19, 1
    %p84 = por %p82, %p83
    %p86 = scmp.ne.s32.totalorder %s71, %s85
    %p87 = scmp.eq.s32.totalorder %s19, 0
    %p88 = por %p86, %p87
    %s90 = sadd.s32 %s89, 1
    %p93 = scmp.eq.s32.totalorder %s13, 1
    %p94 = scmp.ne.s32.totalorder %s89, %s91
    %p95 = scmp.eq.s32.totalorder %s13, 0
    %p96 = por %p94, %p95
    %p97 = scmp.ne.s32.totalorder %s89, %s91
    %p98 = scmp.eq.s32.totalorder %s18, 1
    %p99 = por %p97, %p98
    %p100 = scmp.ne.s32.totalorder %s91, %s92
    %p101 = scmp.eq.s32.totalorder %s18, 0
    %p102 = por %p100, %p101
    %p103 = scmp.ne.s32.totalorder %s91, %s92
    %p104 = scmp.eq.s32.totalorder %s19, 1
    %p105 = por %p103, %p104
    %p107 = scmp.ne.s32.totalorder %s92, %s106
    %p108 = scmp.eq.s32.totalorder %s19, 0
    %p109 = por %p107, %p108
    %s111 = sadd.s32 %s110, 1
    %p114 = scmp.eq.s32.totalorder %s13, 1
    %p115 = scmp.ne.s32.totalorder %s110, %s112
    %p116 = scmp.eq.s32.totalorder %s13, 0
    %p117 = por %p115, %p116
    %p118 = scmp.ne.s32.totalorder %s110, %s112
    %p119 = scmp.eq.s32.totalorder %s18, 1
    %p120 = por %p118, %p119
    %p121 = scmp.ne.s32.totalorder %s112, %s113
    %p122 = scmp.eq.s32.totalorder %s18, 0
    %p123 = por %p121, %p122
    %p124 = scmp.ne.s32.totalorder %s112, %s113
    %p125 = scmp.eq.s32.totalorder %s19, 1
    %p126 = por %p124, %p125
    %p128 = scmp.ne.s32.totalorder %s113, %s127
    %p129 = scmp.eq.s32.totalorder %s19, 0
    %p130 = por %p128, %p129
    %s132 = sadd.s32 %s131, 1
    %p135 = scmp.eq.s32.totalorder %s13, 1
    %p136 = scmp.ne.s32.totalorder %s131, %s133
    %p137 = scmp.eq.s32.totalorder %s13, 0
    %p138 = por %p136, %p137
    %p139 = scmp.ne.s32.totalorder %s131, %s133
    %p140 = scmp.eq.s32.totalorder %s18, 1
    %p141 = por %p139, %p140
    %p142 = scmp.ne.s32.totalorder %s133, %s134
    %p143 = scmp.eq.s32.totalorder %s18, 0
    %p144 = por %p142, %p143
    %p145 = scmp.ne.s32.totalorder %s133, %s134
    %p146 = scmp.eq.s32.totalorder %s19, 1
    %p147 = por %p145, %p146
    %p149 = scmp.ne.s32.totalorder %s134, %s148
    %p150 = scmp.eq.s32.totalorder %s19, 0
    %p151 = por %p149, %p150
    %s153 = sadd.s32 %s152, 1
    %p156 = scmp.eq.s32.totalorder %s13, 1
    %p157 = scmp.ne.s32.totalorder %s152, %s154
    %p158 = scmp.eq.s32.totalorder %s13, 0
    %p159 = por %p157, %p158
    %p160 = scmp.ne.s32.totalorder %s152, %s154
    %p161 = scmp.eq.s32.totalorder %s18, 1
    %p162 = por %p160, %p161
    %p163 = scmp.ne.s32.totalorder %s154, %s155
    %p164 = scmp.eq.s32.totalorder %s18, 0
    %p165 = por %p163, %p164
    %p166 = scmp.ne.s32.totalorder %s154, %s155
    %p167 = scmp.eq.s32.totalorder %s19, 1
    %p168 = por %p166, %p167
    %p170 = scmp.ne.s32.totalorder %s155, %s169
    %p171 = scmp.eq.s32.totalorder %s19, 0
    %p172 = por %p170, %p171
    %s173 = ssub.s32 %s13, %s20
    %p174 = scmp.eq.s32.totalorder %s173, 0
    %s176 = sadd.s32 %s175, 1
    %s177 = scalar_select %p174, %s175, %s176
    %p180 = pneg %p174
    %p181 = scmp.eq.s32.totalorder %s13, 1
    %p182 = por %p180, %p181
    %p183 = scmp.ne.s32.totalorder %s175, %s178
    %p184 = scmp.eq.s32.totalorder %s13, 0
    %p185 = por %p183, %p184
    %p186 = scmp.ne.s32.totalorder %s175, %s178
    %p187 = scmp.eq.s32.totalorder %s18, 1
    %p188 = por %p186, %p187
    %p189 = scmp.ne.s32.totalorder %s178, %s179
    %p190 = scmp.eq.s32.totalorder %s18, 0
    %p191 = por %p189, %p190
    %p192 = scmp.ne.s32.totalorder %s178, %s179
    %p193 = scmp.eq.s32.totalorder %s19, 1
    %p194 = por %p192, %p193
    %p196 = scmp.ne.s32.totalorder %s179, %s195
    %p197 = scmp.eq.s32.totalorder %s19, 0
    %p198 = por %p196, %p197
    %p199 = scmp.le.s32.totalorder 1, %s13
    %p200 = scmp.lt.s32.totalorder %s13, 3
    %p201 = pnand %p199, %p200
    %p202 = pneg %p201
    // Predicated region
    $region9: #{basic_block_forward.1} parent=5 // pred_check
      _
    $region10: #{basic_block_forward.1} parent=5 // pred_check_branch
      %204 = sbr.rel (%p201) target = $region12
    $region11: #{basic_block_forward.1} parent=5 // pred_region
      %s205 = ssub.s32 %s13, 1
      // Predicated region
      $region13: #{basic_block_forward.1} parent=11 // pred_check
        %p206 = pneg %p60
      $region14: #{basic_block_forward.1} parent=11 // pred_check_branch
        %208 = sbr.rel (%p206) target = $region16
      $region15: #{basic_block_forward.1} parent=11 // pred_region
        _
      $region16: #{basic_block_forward.1} parent=11 // pred_fallthru
        _
      // Predicated region
      $region17: #{basic_block_forward.1} parent=11 // pred_check
        %p209 = pneg %p81
      $region18: #{basic_block_forward.1} parent=11 // pred_check_branch
        %211 = sbr.rel (%p209) target = $region20
      $region19: #{basic_block_forward.1} parent=11 // pred_region
        _
      $region20: #{basic_block_forward.1} parent=11 // pred_fallthru
        _
      // Predicated region
      $region21: #{basic_block_forward.1} parent=11 // pred_check
        %p212 = pneg %p102
      $region22: #{basic_block_forward.1} parent=11 // pred_check_branch
        %214 = sbr.rel (%p212) target = $region24
      $region23: #{basic_block_forward.1} parent=11 // pred_region
        _
      $region24: #{basic_block_forward.1} parent=11 // pred_fallthru
        _
      // Predicated region
      $region25: #{basic_block_forward.1} parent=11 // pred_check
        %p215 = pneg %p123
      $region26: #{basic_block_forward.1} parent=11 // pred_check_branch
        %217 = sbr.rel (%p215) target = $region28
      $region27: #{basic_block_forward.1} parent=11 // pred_region
        _
      $region28: #{basic_block_forward.1} parent=11 // pred_fallthru
        _
      // Predicated region
      $region29: #{basic_block_forward.1} parent=11 // pred_check
        %p218 = pneg %p144
      $region30: #{basic_block_forward.1} parent=11 // pred_check_branch
        %220 = sbr.rel (%p218) target = $region32
      $region31: #{basic_block_forward.1} parent=11 // pred_region
        _
      $region32: #{basic_block_forward.1} parent=11 // pred_fallthru
        _
      // Predicated region
      $region33: #{basic_block_forward.1} parent=11 // pred_check
        %p221 = pneg %p165
      $region34: #{basic_block_forward.1} parent=11 // pred_check_branch
        %223 = sbr.rel (%p221) target = $region36
      $region35: #{basic_block_forward.1} parent=11 // pred_region
        _
      $region36: #{basic_block_forward.1} parent=11 // pred_fallthru
        _
    $region12: #{basic_block_forward.1} parent=5 // pred_fallthru
      _
    %p224 = scmp.lt.s32.totalorder %s13, 2
    // Predicated region
    $region37: #{basic_block_forward.1} parent=5 // pred_check
      %p225 = pneg %p224
    $region38: #{basic_block_forward.1} parent=5 // pred_check_branch
      %227 = sbr.rel (%p225) target = $region40
    $region39: #{basic_block_forward.1} parent=5 // pred_region
      // Predicated region
      $region41: #{basic_block_forward.1} parent=39 // pred_check
        %p228 = pneg %p33
      $region42: #{basic_block_forward.1} parent=39 // pred_check_branch
        %230 = sbr.rel (%p228) target = $region44
      $region43: #{basic_block_forward.1} parent=39 // pred_region
        %p231 = scmp.lt.s32.totalorder %s13, 1
        %s232 = scalar_select %p231, %s13, 1
        %s233 = smul.addr %s232, 5
        %s234 = smul.addr %s233, 4
        %s235 = scalar_lea.vmem %s0, %s234
      $region44: #{basic_block_forward.1} parent=39 // pred_fallthru
        _
    $region40: #{basic_block_forward.1} parent=5 // pred_fallthru
      _
    %p236 = scmp.le.s32.totalorder 1, %s13
    %p237 = scmp.lt.s32.totalorder %s13, 3
    %p238 = pnand %p236, %p237
    %p239 = pneg %p238
    // Predicated region
    $region45: #{basic_block_forward.1} parent=5 // pred_check
      _
    $region46: #{basic_block_forward.1} parent=5 // pred_check_branch
      %241 = sbr.rel (%p238) target = $region48
    $region47: #{basic_block_forward.1} parent=5 // pred_region
      %s242 = ssub.s32 %s13, 1
      %p243 = scmp.lt.s32.totalorder %s18, 1
      %s244 = scalar_select %p243, %s18, 1
      %s245 = smul.addr %s244, 5
      %s246 = smul.addr %s245, 4
      %s247 = scalar_lea.vmem %s0, %s246
      %p248 = pneg %p39
      %p249 = pneg %p36
      %p250 = pneg %p60
      %p251 = pneg %p57
      %p252 = pneg %p81
      %p253 = pneg %p78
      %p254 = pneg %p102
      %p255 = pneg %p99
      %p256 = pneg %p123
      %p257 = pneg %p120
      %p258 = pneg %p144
      %p259 = pneg %p141
      %p260 = pneg %p165
      %p261 = pneg %p162
      %p262 = pneg %p191
      %p263 = pneg %p188
      %p264 = scmp.lt.s32.totalorder %s18, 1
      %s265 = scalar_select %p264, %s18, 1
      %s266 = smul.addr %s265, 8
      %s267 = scalar_lea.vmem %s7, %s266
      %p268 = scmp.lt.s32.totalorder %s18, 1
      %s269 = scalar_select %p268, %s18, 1
      %s270 = smul.addr %s269, 5
      %s271 = smul.addr %s270, 4
      %s272 = scalar_lea.vmem %s0, %s271
      %p273 = scmp.lt.s32.totalorder %s18, 1
      %s274 = scalar_select %p273, %s18, 1
      %s275 = smul.addr %s274, 8
      %s276 = scalar_lea.vmem %s7, %s275
      %v278 = vld [vmem:[%s1] sm:$0xf]
      %v279 = vld [vmem:[%s272] sm:$0xf]
      %v280 = vld [vmem:[%s272 + $0x4] sm:$0xf]
      %v281 = vld [vmem:[%s272 + $0x8] sm:$0xf]
      %v282 = vld [vmem:[%s272 + $0xc] sm:$0xf]
      %v283 = vld [vmem:[%s272 + $0x10] sm:$0x3]
      %v284 = vld [vmem:[%s2] sm:$0xff]
      %286 = vset.pattern.permute.xlu0 0
      %287 = vperm.xlu0 %286, %v284
      %v288 = vpop.permute.xlu0 %287
      %v295 = vunpack.c.l.b16 %v279
      %v296 = vunpack.c.l.b16 %v280
      %v297 = vunpack.c.l.b16 %v281
      %v298 = vunpack.c.l.b16 %v282
      %v299 = vunpack.c.l.b16 %v283
      %v300 = vpack.c.b16 %v296, %v295
      %v301 = vpack.c.b16 %v298, %v297
      %v302 = vpack.c.b16 %v299, %v299
      %vm305 = vcmask 293888
      %v307 = vsel %vm305, %v278, 0
      %vm309 = vcmask 1041408
      %v311 = vsel %vm309, %v302, 0
      %313 = vmatprep.subr.bf16.mxu0 0
      %314 = vmatpush1.bf16.msra.mxu0 %v300
      %315 = vmatprep.subr.bf16.mxu0 0
      %316 = vmatpush1.bf16.msra.mxu0 %v301
      %317 = vmatprep.subr.bf16.mxu0 0
      %318 = vmatpush1.bf16.msra.mxu0 %v311
      %319 = vmatprep.subr.bf16.mxu0 0
      %320 = vmatpush1.bf16.msra.mxu0 0
      %321 = vmatprep.subr.bf16.mxu0 0
      %322 = vmatpush1.bf16.msra.mxu0 0
      %323 = vmatprep.subr.bf16.mxu0 0
      %324 = vmatpush1.bf16.msra.mxu0 0
      %325 = vmatprep.subr.bf16.mxu0 0
      %326 = vmatpush1.bf16.msra.mxu0 0
      %327 = vmatprep.subr.bf16.mxu0 0
      %328 = vmatpush1.bf16.msra.mxu0 0
      %329 = vmatprep.subr.bf16.mxu0 0
      %330 = vmatpush1.bf16.msra.mxu0 0
      %331 = vmatprep.subr.bf16.mxu0 0
      %332 = vmatpush1.bf16.msra.mxu0 0
      %333 = vmatprep.subr.bf16.mxu0 0
      %334 = vmatpush1.bf16.msra.mxu0 0
      %335 = vmatprep.subr.bf16.mxu0 0
      %336 = vmatpush1.bf16.msra.mxu0 0
      %337 = vmatprep.subr.bf16.mxu0 0
      %338 = vmatpush1.bf16.msra.mxu0 0
      %339 = vmatprep.subr.bf16.mxu0 0
      %340 = vmatpush1.bf16.msra.mxu0 0
      %341 = vmatprep.subr.bf16.mxu0 0
      %342 = vmatpush1.bf16.msra.mxu0 0
      %343 = vmatprep.subr.bf16.mxu0 0
      %344 = vmatpush1.bf16.msra.mxu0 0
      %345 = vmatprep.mubr.bf16.mxu0 0
      %346 = vmatmul.mubr.bf16.gmra.mrb[0].mxu0 %v307
      %v347 = vpop.f32.mrb[0].mxu0
      %v348 = vadd.f32 %v288, %v347
      %v349 = vpop.f32.mrb[0].mxu0
      %v350 = vpop.f32.mrb[0].mxu0
      %v351 = vpop.f32.mrb[0].mxu0
      %352 = vdwg.mxu0
      %v353 = vmax.f32 %v348, 0.0
      %vm354 = vcmask 1048504
      %355 = vst.msk [vmem:[#allocation2] sm:$0xff] %vm354, 0.0
      %vm356 = vcmask 597504
      %357 = vst.msk [vmem:[#allocation2 + $0x8] sm:$0xff] %vm356, 0.0
      %vm358 = vcmask 523264
      %359 = vst.msk [vmem:[#allocation2 + $0x8] sm:$0xff] %vm358, %v353
      %v360 = vlaneseq
      %v361 = vand.u32 %v360, 127
      %vm362 = vcmp.lt.s32.totalorder %v361, 0
      %v363 = vsub.s32 0, %v361
      %v364 = vsel %vm362, %v363, %v361
      %v365 = vshrl.u32 %v364, 3
      %v366 = vand.u32 %v364, 7
      %v367 = vsub.s32 0, %v366
      %v368 = vsel %vm362, %v367, %v366
      %vm369 = vcmp.ne.s32.totalorder %v368, 0
      %vm370 = vcmp.lt.s32.totalorder %v368, 0
      %vm371 = vmand %vm370, %vm369
      %v372 = vadd.s32 %v368, 8
      %v373 = vsel %vm371, %v372, %v368
      %vm374 = vcmp.ge.s32.totalorder %v373, 1
      %vm375 = vcmp.le.s32.totalorder %v373, 6
      %v376 = vld [vmem:[#allocation2] sm:$0xff]
      %v377 = vld [vmem:[#allocation2 + $0x8] sm:$0xff]
      %380 = vrot.lane.b32.xlu0 %v376, 9
      %v381 = vpop.permute.xlu0 %380
      %382 = vrot.lane.b32.xlu0 %v377, 9
      %v383 = vpop.permute.xlu0 %382
      %vm384 = vcmask 72704
      %v385 = vsel %vm384, %v381, %v383
      %v387 = vsel %vm374, %v385, 0.0
      %388 = vrot.lane.b32.xlu0 %v376, 7
      %v389 = vpop.permute.xlu0 %388
      %390 = vrot.lane.b32.xlu0 %v377, 7
      %v391 = vpop.permute.xlu0 %390
      %vm392 = vcmask 56320
      %v393 = vsel %vm392, %v389, %v391
      %v395 = vsel %vm375, %v393, 0.0
      %396 = vrot.lane.b32.xlu0 %v376, 1
      %v397 = vpop.permute.xlu0 %396
      %398 = vrot.lane.b32.xlu0 %v377, 1
      %v399 = vpop.permute.xlu0 %398
      %vm400 = vcmask 7168
      %v401 = vsel %vm400, %v397, %v399
      %v403 = vsel %vm374, %v401, 0.0
      %404 = vrot.lane.b32.xlu0 %v377, 127
      %v405 = vpop.permute.xlu0 %404
      %v407 = vsel %vm375, %v405, 0.0
      %408 = vrot.lane.b32.xlu0 %v377, 121
      %v409 = vpop.permute.xlu0 %408
      %v411 = vsel %vm374, %v409, 0.0
      %412 = vrot.lane.b32.xlu0 %v377, 119
      %v413 = vpop.permute.xlu0 %412
      %v415 = vsel %vm375, %v413, 0.0
      %416 = vrot.lane.b32.xlu0 %v376, 8
      %v417 = vpop.permute.xlu0 %416
      %418 = vrot.lane.b32.xlu0 %v377, 8
      %v419 = vpop.permute.xlu0 %418
      %vm420 = vcmask 64512
      %v421 = vsel %vm420, %v417, %v419
      %423 = vrot.lane.b32.xlu0 %v377, 120
      %v424 = vpop.permute.xlu0 %423
      %v426 = vpack.c.bf16 %v421, %v387
      %v427 = vpack.c.bf16 %v403, %v395
      %v428 = vpack.c.bf16 %v407, %v377
      %v429 = vpack.c.bf16 %v424, %v411
      %v430 = vpack.c.bf16 %v415, %v415
      %v431 = vld [vmem:[%s3] sm:$0xf]
      %v432 = vld [vmem:[%s4] sm:$0xff]
      %434 = vset.pattern.permute.xlu0 0
      %435 = vperm.xlu0 %434, %v432
      %v436 = vpop.permute.xlu0 %435
      %vm438 = vcmask 588800
      %v440 = vsel %vm438, %v431, 0
      %vm442 = vcmask 1043456
      %v444 = vsel %vm442, %v430, 0
      %446 = vmatprep.subr.bf16.mxu0 0
      %447 = vmatpush1.bf16.msra.mxu0 %v426
      %448 = vmatprep.subr.bf16.mxu0 0
      %449 = vmatpush1.bf16.msra.mxu0 %v427
      %450 = vmatprep.subr.bf16.mxu0 0
      %451 = vmatpush1.bf16.msra.mxu0 %v428
      %452 = vmatprep.subr.bf16.mxu0 0
      %453 = vmatpush1.bf16.msra.mxu0 %v429
      %454 = vmatprep.subr.bf16.mxu0 0
      %455 = vmatpush1.bf16.msra.mxu0 %v444
      %456 = vmatprep.subr.bf16.mxu0 0
      %457 = vmatpush1.bf16.msra.mxu0 0
      %458 = vmatprep.subr.bf16.mxu0 0
      %459 = vmatpush1.bf16.msra.mxu0 0
      %460 = vmatprep.subr.bf16.mxu0 0
      %461 = vmatpush1.bf16.msra.mxu0 0
      %462 = vmatprep.subr.bf16.mxu0 0
      %463 = vmatpush1.bf16.msra.mxu0 0
      %464 = vmatprep.subr.bf16.mxu0 0
      %465 = vmatpush1.bf16.msra.mxu0 0
      %466 = vmatprep.subr.bf16.mxu0 0
      %467 = vmatpush1.bf16.msra.mxu0 0
      %468 = vmatprep.subr.bf16.mxu0 0
      %469 = vmatpush1.bf16.msra.mxu0 0
      %470 = vmatprep.subr.bf16.mxu0 0
      %471 = vmatpush1.bf16.msra.mxu0 0
      %472 = vmatprep.subr.bf16.mxu0 0
      %473 = vmatpush1.bf16.msra.mxu0 0
      %474 = vmatprep.subr.bf16.mxu0 0
      %475 = vmatpush1.bf16.msra.mxu0 0
      %476 = vmatprep.subr.bf16.mxu0 0
      %477 = vmatpush1.bf16.msra.mxu0 0
      %478 = vmatprep.mubr.bf16.mxu0 0
      %479 = vmatmul.mubr.bf16.gmra.mrb[0].mxu0 %v440
      %v480 = vpop.f32.mrb[0].mxu0
      %v481 = vadd.f32 %v436, %v480
      %v482 = vpop.f32.mrb[0].mxu0
      %v483 = vpop.f32.mrb[0].mxu0
      %v484 = vpop.f32.mrb[0].mxu0
      %485 = vdwg.mxu0
      %v486 = vld [vmem:[%s272 + $0x8] sm:$0x3]
      %v487 = vld [vmem:[%s5] sm:$0xf]
      %v488 = vld [vmem:[%s6] sm:$0xff]
      %490 = vset.pattern.permute.xlu0 0
      %491 = vperm.xlu0 %490, %v488
      %v492 = vpop.permute.xlu0 %491
      %vm494 = vcmask 31744
      %v496 = vsel %vm494, %v487, 0
      %v499 = vsel %vm309, %v486, 0
      %501 = vmatprep.subr.bf16.mxu0 0
      %502 = vmatpush1.bf16.msra.mxu0 %v499
      %503 = vmatprep.subr.bf16.mxu0 0
      %504 = vmatpush1.bf16.msra.mxu0 0
      %505 = vmatprep.subr.bf16.mxu0 0
      %506 = vmatpush1.bf16.msra.mxu0 0
      %507 = vmatprep.subr.bf16.mxu0 0
      %508 = vmatpush1.bf16.msra.mxu0 0
      %509 = vmatprep.subr.bf16.mxu0 0
      %510 = vmatpush1.bf16.msra.mxu0 0
      %511 = vmatprep.subr.bf16.mxu0 0
      %512 = vmatpush1.bf16.msra.mxu0 0
      %513 = vmatprep.subr.bf16.mxu0 0
      %514 = vmatpush1.bf16.msra.mxu0 0
      %515 = vmatprep.subr.bf16.mxu0 0
      %516 = vmatpush1.bf16.msra.mxu0 0
      %517 = vmatprep.subr.bf16.mxu0 0
      %518 = vmatpush1.bf16.msra.mxu0 0
      %519 = vmatprep.subr.bf16.mxu0 0
      %520 = vmatpush1.bf16.msra.mxu0 0
      %521 = vmatprep.subr.bf16.mxu0 0
      %522 = vmatpush1.bf16.msra.mxu0 0
      %523 = vmatprep.subr.bf16.mxu0 0
      %524 = vmatpush1.bf16.msra.mxu0 0
      %525 = vmatprep.subr.bf16.mxu0 0
      %526 = vmatpush1.bf16.msra.mxu0 0
      %527 = vmatprep.subr.bf16.mxu0 0
      %528 = vmatpush1.bf16.msra.mxu0 0
      %529 = vmatprep.subr.bf16.mxu0 0
      %530 = vmatpush1.bf16.msra.mxu0 0
      %531 = vmatprep.subr.bf16.mxu0 0
      %532 = vmatpush1.bf16.msra.mxu0 0
      %533 = vmatprep.mubr.bf16.mxu0 0
      %534 = vmatmul.mubr.bf16.gmra.mrb[0].mxu0 %v496
      %v535 = vpop.f32.mrb[0].mxu0
      %v536 = vadd.f32 %v492, %v535
      %v537 = vpop.f32.mrb[0].mxu0
      %v538 = vpop.f32.mrb[0].mxu0
      %v539 = vpop.f32.mrb[0].mxu0
      %540 = vdwg.mxu0
      %v541 = vmax.f32 %v536, 0.0
      %v542 = vmax.f32 %v481, 0.0
      %v543 = vadd.f32 %v542, %v541
      %544 = vst.msk [vmem:[%s276] sm:$0xff] %vm358, %v543
      %p545 = scmp.lt.s32.totalorder %s18, 1
      %s546 = scalar_select %p545, %s18, 1
      %s547 = smul.addr %s546, 8
      %s548 = scalar_lea.vmem %s7, %s547
      // Predicated region
      $region49: #{basic_block_forward.1} parent=47 // pred_check
        %p549 = pneg %p188
      $region50: #{basic_block_forward.1} parent=47 // pred_check_branch
        %551 = sbr.rel (%p549) target = $region52
      $region51: #{basic_block_forward.1} parent=47 // pred_region
        _
      $region52: #{basic_block_forward.1} parent=47 // pred_fallthru
        _
    $region48: #{basic_block_forward.1} parent=5 // pred_fallthru
      _
    %p552 = scmp.le.s32.totalorder 2, %s13
    // Predicated region
    $region53: #{basic_block_forward.1} parent=5 // pred_check
      %p553 = pneg %p552
    $region54: #{basic_block_forward.1} parent=5 // pred_check_branch
      %555 = sbr.rel (%p553) target = $region56
    $region55: #{basic_block_forward.1} parent=5 // pred_region
      %s556 = ssub.s32 %s13, 2
      // Predicated region
      $region57: #{basic_block_forward.1} parent=55 // pred_check
        %p557 = pneg %p194
      $region58: #{basic_block_forward.1} parent=55 // pred_check_branch
        %559 = sbr.rel (%p557) target = $region60
      $region59: #{basic_block_forward.1} parent=55 // pred_region
        %p560 = scmp.lt.s32.totalorder %s19, 1
        %s561 = scalar_select %p560, %s19, 1
        %s562 = smul.addr %s561, 8
        %s563 = scalar_lea.vmem %s7, %s562
      $region60: #{basic_block_forward.1} parent=55 // pred_fallthru
        _
    $region56: #{basic_block_forward.1} parent=5 // pred_fallthru
      _
  $region6: #{basic_block_forward.1} parent=0 // loop_footer
    %s17 = sadd.s32 1, %s13
  $region7: #{basic_block_forward.1} parent=0 // loop_footer_branch
    %12 = sbr.rel target = $region3
  $region8: #{basic_block_forward.1} parent=0 // loop_exit
    _

</llo_original>
